<compile_context>
chip_gen: v7x
topology: tpu7x:2x2x1
jax: 0.10.0
libtpu: 0.0.40
codegen_flags: <defaults>
</compile_context>

<pallas_src>
import functools

import jax
import jax.numpy as jnp
from jax.experimental import pallas as pl
from jax.experimental.pallas import tpu as pltpu

EPS = 1e-5


def _resblock_kernel(x_ref, w1_ref, w2_ref, mask_ref, out_ref, *, H, W, C):
    """One batch element per grid step.

    x_ref    : (1, C, H*W)   input, channels on sublanes, spatial on lanes
    w*_ref   : (C, 9*C)      conv weights, [cout, tap*C + cin], tap = ky*3+kx
    mask_ref : (9, 1, H*W)   f32 border-validity mask per tap (zero padding)
    out_ref  : (1, C, H*W)
    """
    HW = H * W
    xf = x_ref[0]                                        # (C, HW) f32

    def conv3x3(a, w_ref):
        # im2col via XLU lane-rolls + border masks; single MXU matmul.
        taps = []
        k = 0
        for dy in (-1, 0, 1):
            for dx in (-1, 0, 1):
                s = dy * W + dx                          # flattened source offset
                if s == 0:
                    taps.append(a)                       # center tap: always valid
                else:
                    # want shifted[i] = a[i + s]  ->  jnp.roll-style shift of -s
                    rolled = pltpu.roll(a, shift=(-s) % HW, axis=1)
                    taps.append(rolled * mask_ref[k])    # (C,HW) * (1,HW)
                k += 1
        a9 = jnp.concatenate(taps, axis=0)               # (9C, HW), sublane stack
        return jnp.dot(w_ref[...], a9,
                       preferred_element_type=jnp.float32)   # (C, HW)

    def inst_norm(y):
        # Single-pass biased statistics over the spatial (lane) axis.
        inv_n = 1.0 / HW
        mean = jnp.sum(y, axis=1, keepdims=True) * inv_n       # (C, 1)
        ex2 = jnp.sum(y * y, axis=1, keepdims=True) * inv_n    # (C, 1)
        var = ex2 - mean * mean
        return (y - mean) * jax.lax.rsqrt(var + EPS)

    # Conv2dBlock #1: conv -> instance norm -> relu   (bias cancels under IN)
    y1 = jnp.maximum(inst_norm(conv3x3(xf, w1_ref)), 0.0)
    # Conv2dBlock #2: conv -> instance norm (no activation)
    y2 = inst_norm(conv3x3(y1, w2_ref))
    # Residual add; lane-dense full-tile store.
    out_ref[0] = (y2 + xf).astype(out_ref.dtype)


def _make_tap_masks(H, W):
    """(9, 1, H*W) f32: 1 where the (dy,dx)-shifted read is in bounds (zero pad)."""
    hh = jnp.arange(H).reshape(H, 1)
    ww = jnp.arange(W).reshape(1, W)
    masks = []
    for dy in (-1, 0, 1):
        for dx in (-1, 0, 1):
            valid = ((hh + dy >= 0) & (hh + dy < H) &
                     (ww + dx >= 0) & (ww + dx < W))
            masks.append(valid.astype(jnp.float32).reshape(1, H * W))
    return jnp.stack(masks, axis=0)


def resblock_forward(x_nchw, w1, b1, w2, b2):
    """x_nchw: (B, C, H, W) f32; w*: (C, C, 3, 3) OIHW; b*: (C,).

    b1/b2 are accepted for interface parity but are mathematically redundant:
    a per-channel bias before InstanceNorm2d(affine=False) cancels exactly.
    """
    del b1, b2
    B, C, H, W = x_nchw.shape
    HW = H * W

    # Free contiguous reshape (no transpose, no pad): NCHW -> (B, C, H*W).
    xf = x_nchw.reshape(B, C, HW).astype(jnp.float32)

    # OIHW (co, ci, ky, kx) -> (co, ky, kx, ci) -> (C, 9*C); column k*C+ci.
    def to_mat(w):
        return jnp.transpose(w, (0, 2, 3, 1)).reshape(C, 9 * C).astype(jnp.float32)

    w1m, w2m = to_mat(w1), to_mat(w2)
    masks = _make_tap_masks(H, W)                        # (9, 1, HW)

    kernel = functools.partial(_resblock_kernel, H=H, W=W, C=C)

    out = pl.pallas_call(
        kernel,
        out_shape=jax.ShapeDtypeStruct((B, C, HW), jnp.float32),
        grid_spec=pltpu.PrefetchScalarGridSpec(
            num_scalar_prefetch=0,
            grid=(B,),
            in_specs=[
                pl.BlockSpec((1, C, HW), lambda b: (b, 0, 0)),
                pl.BlockSpec((C, 9 * C), lambda b: (0, 0)),
                pl.BlockSpec((C, 9 * C), lambda b: (0, 0)),
                pl.BlockSpec((9, 1, HW), lambda b: (0, 0, 0)),
            ],
            out_specs=pl.BlockSpec((1, C, HW), lambda b: (b, 0, 0)),
        ),
        compiler_params=pltpu.CompilerParams(
            dimension_semantics=("parallel",)),
    )(xf, w1m, w2m, masks)

    # Free reshape back to NCHW.
    return out.reshape(B, C, H, W)


def resblock_reference(x, w1, b1, w2, b2):
    """Pure-JAX reference (NCHW) mirroring the PyTorch module."""
    def conv(x, w, b):
        y = jax.lax.conv_general_dilated(
            x, w, window_strides=(1, 1), padding=((1, 1), (1, 1)),
            dimension_numbers=('NCHW', 'OIHW', 'NCHW'))
        return y + b[None, :, None, None]

    def inorm(y):
        m = y.mean(axis=(2, 3), keepdims=True)
        v = ((y - m) ** 2).mean(axis=(2, 3), keepdims=True)
        return (y - m) * jax.lax.rsqrt(v + EPS)

    y1 = jax.nn.relu(inorm(conv(x, w1, b1)))
    y2 = inorm(conv(y1, w2, b2))
    return y2 + x


if __name__ == "__main__":
    B, C, H, W = 2, 8, 16, 16
    key = jax.random.PRNGKey(0)
    kx, k1, k2, k3, k4 = jax.random.split(key, 5)

    # Deterministic synthetic parameters (shapes from nn.Conv2d(dim, dim, 3)).
    fan_in = C * 3 * 3
    bound = 1.0 / (fan_in ** 0.5)
    x = jax.random.normal(kx, (B, C, H, W), dtype=jnp.float32)
    w1 = jax.random.uniform(k1, (C, C, 3, 3), jnp.float32, -bound, bound)
    b1 = jax.random.uniform(k2, (C,), jnp.float32, -bound, bound)
    w2 = jax.random.uniform(k3, (C, C, 3, 3), jnp.float32, -bound, bound)
    b2 = jax.random.uniform(k4, (C,), jnp.float32, -bound, bound)

    out = jax.block_until_ready(resblock_forward(x, w1, b1, w2, b2))

    ref = jax.block_until_ready(resblock_reference(x, w1, b1, w2, b2))
    assert out.shape == (B, C, H, W)
    assert jnp.allclose(out, ref, atol=1e-4, rtol=1e-4), \
        f"max abs err {jnp.max(jnp.abs(out - ref))}"

    print("KERNEL_OK")
</pallas_src>

<mosaic_0001>
module attributes {stable_mosaic.version = 11 : i64} {
  func.func @_resblock_kernel(%arg0: i32, %arg1: memref<1x8x256xf32, #tpu.memory_space<vmem>>, %arg2: memref<8x72xf32, #tpu.memory_space<vmem>>, %arg3: memref<8x72xf32, #tpu.memory_space<vmem>>, %arg4: memref<9x1x256xf32, #tpu.memory_space<vmem>>, %arg5: memref<1x8x256xf32, #tpu.memory_space<vmem>>) attributes {dimension_semantics = [#tpu.dimension_semantics<parallel>], iteration_bounds = array<i64: 2>, scalar_prefetch = 0 : i64, scratch_operands = 0 : i64, tpu.core_type = #tpu.core_type<tc>, window_params = [{transform_indices = @transform_0, window_bounds = array<i64: 1, 8, 256>}, {pipeline_mode = #tpu.pipeline_mode<synchronous>, transform_indices = @transform_1, window_bounds = array<i64: 8, 72>}, {pipeline_mode = #tpu.pipeline_mode<synchronous>, transform_indices = @transform_2, window_bounds = array<i64: 8, 72>}, {pipeline_mode = #tpu.pipeline_mode<synchronous>, transform_indices = @transform_3, window_bounds = array<i64: 9, 1, 256>}, {transform_indices = @transform_4, window_bounds = array<i64: 1, 8, 256>}]} {
    %c0 = arith.constant 0 : index
    %c0_0 = arith.constant 0 : index
    %c0_1 = arith.constant 0 : index
    %0 = vector.load %arg1[%c0, %c0_0, %c0_1] : memref<1x8x256xf32, #tpu.memory_space<vmem>>, vector<1x8x256xf32>
    %1 = vector.shape_cast %0 : vector<1x8x256xf32> to vector<8x256xf32>
    %c17_i32 = arith.constant 17 : i32
    %2 = tpu.dynamic_rotate %1 by %c17_i32 dim 1 : vector<8x256xf32>, i32 -> vector<8x256xf32>
    %c0_2 = arith.constant 0 : index
    %c0_3 = arith.constant 0 : index
    %c0_4 = arith.constant 0 : index
    %3 = vector.load %arg4[%c0_2, %c0_3, %c0_4] : memref<9x1x256xf32, #tpu.memory_space<vmem>>, vector<1x1x256xf32>
    %4 = vector.shape_cast %3 : vector<1x1x256xf32> to vector<1x256xf32>
    %5 = vector.broadcast %4 : vector<1x256xf32> to vector<8x256xf32>
    %6 = arith.mulf %2, %5 : vector<8x256xf32>
    %c16_i32 = arith.constant 16 : i32
    %7 = tpu.dynamic_rotate %1 by %c16_i32 dim 1 : vector<8x256xf32>, i32 -> vector<8x256xf32>
    %c1 = arith.constant 1 : index
    %c0_5 = arith.constant 0 : index
    %c0_6 = arith.constant 0 : index
    %8 = vector.load %arg4[%c1, %c0_5, %c0_6] : memref<9x1x256xf32, #tpu.memory_space<vmem>>, vector<1x1x256xf32>
    %9 = vector.shape_cast %8 : vector<1x1x256xf32> to vector<1x256xf32>
    %10 = vector.broadcast %9 : vector<1x256xf32> to vector<8x256xf32>
    %11 = arith.mulf %7, %10 : vector<8x256xf32>
    %c15_i32 = arith.constant 15 : i32
    %12 = tpu.dynamic_rotate %1 by %c15_i32 dim 1 : vector<8x256xf32>, i32 -> vector<8x256xf32>
    %c2 = arith.constant 2 : index
    %c0_7 = arith.constant 0 : index
    %c0_8 = arith.constant 0 : index
    %13 = vector.load %arg4[%c2, %c0_7, %c0_8] : memref<9x1x256xf32, #tpu.memory_space<vmem>>, vector<1x1x256xf32>
    %14 = vector.shape_cast %13 : vector<1x1x256xf32> to vector<1x256xf32>
    %15 = vector.broadcast %14 : vector<1x256xf32> to vector<8x256xf32>
    %16 = arith.mulf %12, %15 : vector<8x256xf32>
    %c1_i32 = arith.constant 1 : i32
    %17 = tpu.dynamic_rotate %1 by %c1_i32 dim 1 : vector<8x256xf32>, i32 -> vector<8x256xf32>
    %c3 = arith.constant 3 : index
    %c0_9 = arith.constant 0 : index
    %c0_10 = arith.constant 0 : index
    %18 = vector.load %arg4[%c3, %c0_9, %c0_10] : memref<9x1x256xf32, #tpu.memory_space<vmem>>, vector<1x1x256xf32>
    %19 = vector.shape_cast %18 : vector<1x1x256xf32> to vector<1x256xf32>
    %20 = vector.broadcast %19 : vector<1x256xf32> to vector<8x256xf32>
    %21 = arith.mulf %17, %20 : vector<8x256xf32>
    %c255_i32 = arith.constant 255 : i32
    %22 = tpu.dynamic_rotate %1 by %c255_i32 dim 1 : vector<8x256xf32>, i32 -> vector<8x256xf32>
    %c5 = arith.constant 5 : index
    %c0_11 = arith.constant 0 : index
    %c0_12 = arith.constant 0 : index
    %23 = vector.load %arg4[%c5, %c0_11, %c0_12] : memref<9x1x256xf32, #tpu.memory_space<vmem>>, vector<1x1x256xf32>
    %24 = vector.shape_cast %23 : vector<1x1x256xf32> to vector<1x256xf32>
    %25 = vector.broadcast %24 : vector<1x256xf32> to vector<8x256xf32>
    %26 = arith.mulf %22, %25 : vector<8x256xf32>
    %c241_i32 = arith.constant 241 : i32
    %27 = tpu.dynamic_rotate %1 by %c241_i32 dim 1 : vector<8x256xf32>, i32 -> vector<8x256xf32>
    %c6 = arith.constant 6 : index
    %c0_13 = arith.constant 0 : index
    %c0_14 = arith.constant 0 : index
    %28 = vector.load %arg4[%c6, %c0_13, %c0_14] : memref<9x1x256xf32, #tpu.memory_space<vmem>>, vector<1x1x256xf32>
    %29 = vector.shape_cast %28 : vector<1x1x256xf32> to vector<1x256xf32>
    %30 = vector.broadcast %29 : vector<1x256xf32> to vector<8x256xf32>
    %31 = arith.mulf %27, %30 : vector<8x256xf32>
    %c240_i32 = arith.constant 240 : i32
    %32 = tpu.dynamic_rotate %1 by %c240_i32 dim 1 : vector<8x256xf32>, i32 -> vector<8x256xf32>
    %c7 = arith.constant 7 : index
    %c0_15 = arith.constant 0 : index
    %c0_16 = arith.constant 0 : index
    %33 = vector.load %arg4[%c7, %c0_15, %c0_16] : memref<9x1x256xf32, #tpu.memory_space<vmem>>, vector<1x1x256xf32>
    %34 = vector.shape_cast %33 : vector<1x1x256xf32> to vector<1x256xf32>
    %35 = vector.broadcast %34 : vector<1x256xf32> to vector<8x256xf32>
    %36 = arith.mulf %32, %35 : vector<8x256xf32>
    %c239_i32 = arith.constant 239 : i32
    %37 = tpu.dynamic_rotate %1 by %c239_i32 dim 1 : vector<8x256xf32>, i32 -> vector<8x256xf32>
    %c8 = arith.constant 8 : index
    %c0_17 = arith.constant 0 : index
    %c0_18 = arith.constant 0 : index
    %38 = vector.load %arg4[%c8, %c0_17, %c0_18] : memref<9x1x256xf32, #tpu.memory_space<vmem>>, vector<1x1x256xf32>
    %39 = vector.shape_cast %38 : vector<1x1x256xf32> to vector<1x256xf32>
    %40 = vector.broadcast %39 : vector<1x256xf32> to vector<8x256xf32>
    %41 = arith.mulf %37, %40 : vector<8x256xf32>
    %42 = tpu.concatenate %6, %11, %16, %21, %1, %26, %31, %36, %41 in 0 : vector<8x256xf32>, vector<8x256xf32>, vector<8x256xf32>, vector<8x256xf32>, vector<8x256xf32>, vector<8x256xf32>, vector<8x256xf32>, vector<8x256xf32>, vector<8x256xf32> -> vector<72x256xf32>
    %c0_19 = arith.constant 0 : index
    %c0_20 = arith.constant 0 : index
    %43 = vector.load %arg2[%c0_19, %c0_20] : memref<8x72xf32, #tpu.memory_space<vmem>>, vector<8x72xf32>
    %cst = arith.constant dense<0.000000e+00> : vector<8x256xf32>
    %44 = tpu.matmul %43, %42, %cst {dimension_numbers = #tpu.dot_dimension_numbers<[1], [0], [0], [1], [0, 0, 1, 1], [], []>} : vector<8x72xf32>, vector<72x256xf32>, vector<8x256xf32> -> vector<8x256xf32>
    %cst_21 = arith.constant dense<0.000000e+00> : vector<8xf32>
    %45 = vector.multi_reduction <add>, %44, %cst_21 [1] : vector<8x256xf32> to vector<8xf32>
    %46 = vector.shape_cast %45 : vector<8xf32> to vector<8x1xf32>
    %cst_22 = arith.constant 3.906250e-03 : f32
    %47 = vector.broadcast %cst_22 : f32 to vector<8x1xf32>
    %48 = arith.mulf %46, %47 : vector<8x1xf32>
    %49 = arith.mulf %44, %44 : vector<8x256xf32>
    %cst_23 = arith.constant dense<0.000000e+00> : vector<8xf32>
    %50 = vector.multi_reduction <add>, %49, %cst_23 [1] : vector<8x256xf32> to vector<8xf32>
    %51 = vector.shape_cast %50 : vector<8xf32> to vector<8x1xf32>
    %cst_24 = arith.constant 3.906250e-03 : f32
    %52 = vector.broadcast %cst_24 : f32 to vector<8x1xf32>
    %53 = arith.mulf %51, %52 : vector<8x1xf32>
    %54 = arith.mulf %48, %48 : vector<8x1xf32>
    %55 = arith.subf %53, %54 : vector<8x1xf32>
    %56 = vector.broadcast %48 : vector<8x1xf32> to vector<8x256xf32>
    %57 = arith.subf %44, %56 : vector<8x256xf32>
    %cst_25 = arith.constant 9.99999974E-6 : f32
    %58 = vector.broadcast %cst_25 : f32 to vector<8x1xf32>
    %59 = arith.addf %55, %58 : vector<8x1xf32>
    %60 = math.rsqrt %59 : vector<8x1xf32>
    %61 = vector.broadcast %60 : vector<8x1xf32> to vector<8x256xf32>
    %62 = arith.mulf %57, %61 : vector<8x256xf32>
    %cst_26 = arith.constant 0.000000e+00 : f32
    %63 = vector.broadcast %cst_26 : f32 to vector<8x256xf32>
    %64 = arith.maximumf %62, %63 : vector<8x256xf32>
    %c17_i32_27 = arith.constant 17 : i32
    %65 = tpu.dynamic_rotate %64 by %c17_i32_27 dim 1 : vector<8x256xf32>, i32 -> vector<8x256xf32>
    %c0_28 = arith.constant 0 : index
    %c0_29 = arith.constant 0 : index
    %c0_30 = arith.constant 0 : index
    %66 = vector.load %arg4[%c0_28, %c0_29, %c0_30] : memref<9x1x256xf32, #tpu.memory_space<vmem>>, vector<1x1x256xf32>
    %67 = vector.shape_cast %66 : vector<1x1x256xf32> to vector<1x256xf32>
    %68 = vector.broadcast %67 : vector<1x256xf32> to vector<8x256xf32>
    %69 = arith.mulf %65, %68 : vector<8x256xf32>
    %c16_i32_31 = arith.constant 16 : i32
    %70 = tpu.dynamic_rotate %64 by %c16_i32_31 dim 1 : vector<8x256xf32>, i32 -> vector<8x256xf32>
    %c1_32 = arith.constant 1 : index
    %c0_33 = arith.constant 0 : index
    %c0_34 = arith.constant 0 : index
    %71 = vector.load %arg4[%c1_32, %c0_33, %c0_34] : memref<9x1x256xf32, #tpu.memory_space<vmem>>, vector<1x1x256xf32>
    %72 = vector.shape_cast %71 : vector<1x1x256xf32> to vector<1x256xf32>
    %73 = vector.broadcast %72 : vector<1x256xf32> to vector<8x256xf32>
    %74 = arith.mulf %70, %73 : vector<8x256xf32>
    %c15_i32_35 = arith.constant 15 : i32
    %75 = tpu.dynamic_rotate %64 by %c15_i32_35 dim 1 : vector<8x256xf32>, i32 -> vector<8x256xf32>
    %c2_36 = arith.constant 2 : index
    %c0_37 = arith.constant 0 : index
    %c0_38 = arith.constant 0 : index
    %76 = vector.load %arg4[%c2_36, %c0_37, %c0_38] : memref<9x1x256xf32, #tpu.memory_space<vmem>>, vector<1x1x256xf32>
    %77 = vector.shape_cast %76 : vector<1x1x256xf32> to vector<1x256xf32>
    %78 = vector.broadcast %77 : vector<1x256xf32> to vector<8x256xf32>
    %79 = arith.mulf %75, %78 : vector<8x256xf32>
    %c1_i32_39 = arith.constant 1 : i32
    %80 = tpu.dynamic_rotate %64 by %c1_i32_39 dim 1 : vector<8x256xf32>, i32 -> vector<8x256xf32>
    %c3_40 = arith.constant 3 : index
    %c0_41 = arith.constant 0 : index
    %c0_42 = arith.constant 0 : index
    %81 = vector.load %arg4[%c3_40, %c0_41, %c0_42] : memref<9x1x256xf32, #tpu.memory_space<vmem>>, vector<1x1x256xf32>
    %82 = vector.shape_cast %81 : vector<1x1x256xf32> to vector<1x256xf32>
    %83 = vector.broadcast %82 : vector<1x256xf32> to vector<8x256xf32>
    %84 = arith.mulf %80, %83 : vector<8x256xf32>
    %c255_i32_43 = arith.constant 255 : i32
    %85 = tpu.dynamic_rotate %64 by %c255_i32_43 dim 1 : vector<8x256xf32>, i32 -> vector<8x256xf32>
    %c5_44 = arith.constant 5 : index
    %c0_45 = arith.constant 0 : index
    %c0_46 = arith.constant 0 : index
    %86 = vector.load %arg4[%c5_44, %c0_45, %c0_46] : memref<9x1x256xf32, #tpu.memory_space<vmem>>, vector<1x1x256xf32>
    %87 = vector.shape_cast %86 : vector<1x1x256xf32> to vector<1x256xf32>
    %88 = vector.broadcast %87 : vector<1x256xf32> to vector<8x256xf32>
    %89 = arith.mulf %85, %88 : vector<8x256xf32>
    %c241_i32_47 = arith.constant 241 : i32
    %90 = tpu.dynamic_rotate %64 by %c241_i32_47 dim 1 : vector<8x256xf32>, i32 -> vector<8x256xf32>
    %c6_48 = arith.constant 6 : index
    %c0_49 = arith.constant 0 : index
    %c0_50 = arith.constant 0 : index
    %91 = vector.load %arg4[%c6_48, %c0_49, %c0_50] : memref<9x1x256xf32, #tpu.memory_space<vmem>>, vector<1x1x256xf32>
    %92 = vector.shape_cast %91 : vector<1x1x256xf32> to vector<1x256xf32>
    %93 = vector.broadcast %92 : vector<1x256xf32> to vector<8x256xf32>
    %94 = arith.mulf %90, %93 : vector<8x256xf32>
    %c240_i32_51 = arith.constant 240 : i32
    %95 = tpu.dynamic_rotate %64 by %c240_i32_51 dim 1 : vector<8x256xf32>, i32 -> vector<8x256xf32>
    %c7_52 = arith.constant 7 : index
    %c0_53 = arith.constant 0 : index
    %c0_54 = arith.constant 0 : index
    %96 = vector.load %arg4[%c7_52, %c0_53, %c0_54] : memref<9x1x256xf32, #tpu.memory_space<vmem>>, vector<1x1x256xf32>
    %97 = vector.shape_cast %96 : vector<1x1x256xf32> to vector<1x256xf32>
    %98 = vector.broadcast %97 : vector<1x256xf32> to vector<8x256xf32>
    %99 = arith.mulf %95, %98 : vector<8x256xf32>
    %c239_i32_55 = arith.constant 239 : i32
    %100 = tpu.dynamic_rotate %64 by %c239_i32_55 dim 1 : vector<8x256xf32>, i32 -> vector<8x256xf32>
    %c8_56 = arith.constant 8 : index
    %c0_57 = arith.constant 0 : index
    %c0_58 = arith.constant 0 : index
    %101 = vector.load %arg4[%c8_56, %c0_57, %c0_58] : memref<9x1x256xf32, #tpu.memory_space<vmem>>, vector<1x1x256xf32>
    %102 = vector.shape_cast %101 : vector<1x1x256xf32> to vector<1x256xf32>
    %103 = vector.broadcast %102 : vector<1x256xf32> to vector<8x256xf32>
    %104 = arith.mulf %100, %103 : vector<8x256xf32>
    %105 = tpu.concatenate %69, %74, %79, %84, %64, %89, %94, %99, %104 in 0 : vector<8x256xf32>, vector<8x256xf32>, vector<8x256xf32>, vector<8x256xf32>, vector<8x256xf32>, vector<8x256xf32>, vector<8x256xf32>, vector<8x256xf32>, vector<8x256xf32> -> vector<72x256xf32>
    %c0_59 = arith.constant 0 : index
    %c0_60 = arith.constant 0 : index
    %106 = vector.load %arg3[%c0_59, %c0_60] : memref<8x72xf32, #tpu.memory_space<vmem>>, vector<8x72xf32>
    %cst_61 = arith.constant dense<0.000000e+00> : vector<8x256xf32>
    %107 = tpu.matmul %106, %105, %cst_61 {dimension_numbers = #tpu.dot_dimension_numbers<[1], [0], [0], [1], [0, 0, 1, 1], [], []>} : vector<8x72xf32>, vector<72x256xf32>, vector<8x256xf32> -> vector<8x256xf32>
    %cst_62 = arith.constant dense<0.000000e+00> : vector<8xf32>
    %108 = vector.multi_reduction <add>, %107, %cst_62 [1] : vector<8x256xf32> to vector<8xf32>
    %109 = vector.shape_cast %108 : vector<8xf32> to vector<8x1xf32>
    %cst_63 = arith.constant 3.906250e-03 : f32
    %110 = vector.broadcast %cst_63 : f32 to vector<8x1xf32>
    %111 = arith.mulf %109, %110 : vector<8x1xf32>
    %112 = arith.mulf %107, %107 : vector<8x256xf32>
    %cst_64 = arith.constant dense<0.000000e+00> : vector<8xf32>
    %113 = vector.multi_reduction <add>, %112, %cst_64 [1] : vector<8x256xf32> to vector<8xf32>
    %114 = vector.shape_cast %113 : vector<8xf32> to vector<8x1xf32>
    %cst_65 = arith.constant 3.906250e-03 : f32
    %115 = vector.broadcast %cst_65 : f32 to vector<8x1xf32>
    %116 = arith.mulf %114, %115 : vector<8x1xf32>
    %117 = arith.mulf %111, %111 : vector<8x1xf32>
    %118 = arith.subf %116, %117 : vector<8x1xf32>
    %119 = vector.broadcast %111 : vector<8x1xf32> to vector<8x256xf32>
    %120 = arith.subf %107, %119 : vector<8x256xf32>
    %cst_66 = arith.constant 9.99999974E-6 : f32
    %121 = vector.broadcast %cst_66 : f32 to vector<8x1xf32>
    %122 = arith.addf %118, %121 : vector<8x1xf32>
    %123 = math.rsqrt %122 : vector<8x1xf32>
    %124 = vector.broadcast %123 : vector<8x1xf32> to vector<8x256xf32>
    %125 = arith.mulf %120, %124 : vector<8x256xf32>
    %126 = arith.addf %125, %1 : vector<8x256xf32>
    %c0_67 = arith.constant 0 : index
    %c0_68 = arith.constant 0 : index
    %c0_69 = arith.constant 0 : index
    %127 = vector.load %arg5[%c0_67, %c0_68, %c0_69] : memref<1x8x256xf32, #tpu.memory_space<vmem>>, vector<1x8x256xf32>
    %128 = vector.shape_cast %127 : vector<1x8x256xf32> to vector<8x256xf32>
    %129 = vector.shape_cast %126 : vector<8x256xf32> to vector<1x8x256xf32>
    tpu.vector_store %arg5[%c0_67, %c0_68, %c0_69], %129 {strides = array<i32>} : memref<1x8x256xf32, #tpu.memory_space<vmem>>, vector<1x8x256xf32>,
    return
  }
  func.func @transform_0(%arg0: i32) -> (i32, i32, i32) {
    %c0_i32 = arith.constant 0 : i32
    %c0_i32_0 = arith.constant 0 : i32
    %c0_i32_1 = arith.constant 0 : i32
    return %arg0, %c0_i32, %c0_i32_0 : i32, i32, i32
  }
  func.func @transform_1(%arg0: i32) -> (i32, i32) {
    %c0_i32 = arith.constant 0 : i32
    %c0_i32_0 = arith.constant 0 : i32
    %c0_i32_1 = arith.constant 0 : i32
    return %c0_i32, %c0_i32_0 : i32, i32
  }
  func.func @transform_2(%arg0: i32) -> (i32, i32) {
    %c0_i32 = arith.constant 0 : i32
    %c0_i32_0 = arith.constant 0 : i32
    %c0_i32_1 = arith.constant 0 : i32
    return %c0_i32, %c0_i32_0 : i32, i32
  }
  func.func @transform_3(%arg0: i32) -> (i32, i32, i32) {
    %c0_i32 = arith.constant 0 : i32
    %c0_i32_0 = arith.constant 0 : i32
    %c0_i32_1 = arith.constant 0 : i32
    %c0_i32_2 = arith.constant 0 : i32
    return %c0_i32, %c0_i32_0, %c0_i32_1 : i32, i32, i32
  }
  func.func @transform_4(%arg0: i32) -> (i32, i32, i32) {
    %c0_i32 = arith.constant 0 : i32
    %c0_i32_0 = arith.constant 0 : i32
    %c0_i32_1 = arith.constant 0 : i32
    return %arg0, %c0_i32, %c0_i32_0 : i32, i32, i32
  }
}

</mosaic_0001>

<llo_original>
// kernel: tpu_custom_call.1
$region0: #{tpu_custom_call.1}
  #allocation0 [shape = 'u32[]', space=smem, size = 0x4, offset = 0x4, fixed_abs, tag = 'smem constant byte address 0x4 - core index']
  #allocation1 [shape = 'u32[144,128]{1,0:T(1,128)}', space=vmem, size = 0x12000, scoped, tag = 'internal scratch']
  %s0 = inlined_call_operand.hbm [shape: f32[2,8,256], index: 0, kind: input, shape index: {}]
  %s1 = inlined_call_operand.hbm [shape: f32[8,72], index: 1, kind: input, shape index: {}]
  %s2 = inlined_call_operand.hbm [shape: f32[8,72], index: 2, kind: input, shape index: {}]
  %s3 = inlined_call_operand.hbm [shape: f32[9,1,256], index: 3, kind: input, shape index: {}]
  %s4 = inlined_call_operand.hbm [shape: f32[2,8,256], index: 4, kind: output, shape index: {}]
  %s5 = sld [smem:[#allocation0]]
  $region65: #{tpu_custom_call.1} parent=0
    _
  %s7 = ssub.s32 1, %s5
  %s8 = scalar_select 0, %s7, %s5
  $region1: #{tpu_custom_call.1} parent=0
    #allocation2 [shape = 'u8[16384]{0}', space=vmem, size = 0x4000, scoped, tag = 'input window, operand 0']
    #allocation3 [shape = 's32[2]{0}', space=sflag, size = 0x8, scoped, tag = 'scoped memory for tpu_custom_call.1']
    #allocation4 [shape = 's32[2]{0}', space=sflag, size = 0x8, scoped, tag = 'scoped memory for tpu_custom_call.1']
    #allocation5 [shape = 'u8[4096]{0}', space=vmem, size = 0x1000, scoped, tag = 'input window, operand 1, single buffered']
    #allocation6 [shape = 's32[1]{0}', space=sflag, size = 0x4, scoped, tag = 'scoped memory for tpu_custom_call.1']
    #allocation7 [shape = 'u8[4096]{0}', space=vmem, size = 0x1000, scoped, tag = 'input window, operand 2, single buffered']
    #allocation8 [shape = 'u8[9216]{0}', space=vmem, size = 0x2400, scoped, tag = 'input window, operand 3, single buffered']
    #allocation9 [shape = 's32[1]{0}', space=sflag, size = 0x4, scoped, tag = 'scoped memory for tpu_custom_call.1']
    #allocation10 [shape = 'u8[16384]{0}', space=vmem, size = 0x4000, scoped, tag = 'output window, operand 0']
    %9 = vsyncpa [#allocation3], 0
    %s10 = scalar_lea.sflag [#allocation3], 1
    %11 = vsyncpa %s10, 0
    %12 = vsyncpa [#allocation6], 0
    %13 = vsyncpa [#allocation9], 0
    %14 = vsyncpa [#allocation4], 0
    %s15 = scalar_lea.sflag [#allocation4], 1
    %16 = vsyncpa %s15, 0
    loop: start=0, step=1, limit=4
    $region2: #{tpu_custom_call.1} parent=1 // loop_pre_header
      _
    $region3: #{tpu_custom_call.1} parent=1 // loop_header
      %s18 = sphi 0, %s22
      %p19 = scmp.ge.s32.totalorder %s18, 4
      %s28 = sphi 0, %s30
      %s31 = sphi 0, %s28
      %s32 = sphi 0, %s31
      %s48 = sphi 0, %s32
      %s52 = sphi 0, %s52
      %s54 = sphi 0, %s52
      %s55 = sphi 0, %s54
      %s69 = sphi 0, %s55
      %s73 = sphi 0, %s73
      %s75 = sphi 0, %s73
      %s76 = sphi 0, %s75
      %s90 = sphi 0, %s76
      %s94 = sphi 0, %s94
      %s96 = sphi 0, %s94
      %s97 = sphi 0, %s96
      %s111 = sphi 0, %s97
      %s117 = sphi 0, %s119
      %s120 = sphi 0, %s117
      %s121 = sphi 0, %s120
      %s137 = sphi 0, %s121
    $region4: #{tpu_custom_call.1} parent=1 // loop_header_branch
      %21 = sbr.rel (%p19) target = $region8
    $region5: #{tpu_custom_call.1} parent=1 // loop_body
      %s23 = ssub.s32 %s18, 1
      %s24 = ssub.s32 %s18, 2
      %s25 = sadd.s32 %s18, 1
      %s26 = ssub.s32 %s18, %s25
      %p27 = scmp.eq.s32.totalorder %s26, 0
      %s29 = sadd.s32 %s28, 1
      %s30 = scalar_select %p27, %s28, %s29
      %p33 = pneg %p27
      %p34 = scmp.eq.s32.totalorder %s18, 1
      %p35 = por %p33, %p34
      %p36 = scmp.ne.s32.totalorder %s28, %s31
      %p37 = scmp.eq.s32.totalorder %s18, 0
      %p38 = por %p36, %p37
      %p39 = scmp.ne.s32.totalorder %s28, %s31
      %p40 = scmp.eq.s32.totalorder %s23, 1
      %p41 = por %p39, %p40
      %p42 = scmp.ne.s32.totalorder %s31, %s32
      %p43 = scmp.eq.s32.totalorder %s23, 0
      %p44 = por %p42, %p43
      %p45 = scmp.ne.s32.totalorder %s31, %s32
      %p46 = scmp.eq.s32.totalorder %s24, 1
      %p47 = por %p45, %p46
      %p49 = scmp.ne.s32.totalorder %s32, %s48
      %p50 = scmp.eq.s32.totalorder %s24, 0
      %p51 = por %p49, %p50
      %s53 = sadd.s32 %s52, 1
      %p56 = scmp.eq.s32.totalorder %s18, 1
      %p57 = scmp.ne.s32.totalorder %s52, %s54
      %p58 = scmp.eq.s32.totalorder %s18, 0
      %p59 = por %p57, %p58
      %p60 = scmp.ne.s32.totalorder %s52, %s54
      %p61 = scmp.eq.s32.totalorder %s23, 1
      %p62 = por %p60, %p61
      %p63 = scmp.ne.s32.totalorder %s54, %s55
      %p64 = scmp.eq.s32.totalorder %s23, 0
      %p65 = por %p63, %p64
      %p66 = scmp.ne.s32.totalorder %s54, %s55
      %p67 = scmp.eq.s32.totalorder %s24, 1
      %p68 = por %p66, %p67
      %p70 = scmp.ne.s32.totalorder %s55, %s69
      %p71 = scmp.eq.s32.totalorder %s24, 0
      %p72 = por %p70, %p71
      %s74 = sadd.s32 %s73, 1
      %p77 = scmp.eq.s32.totalorder %s18, 1
      %p78 = scmp.ne.s32.totalorder %s73, %s75
      %p79 = scmp.eq.s32.totalorder %s18, 0
      %p80 = por %p78, %p79
      %p81 = scmp.ne.s32.totalorder %s73, %s75
      %p82 = scmp.eq.s32.totalorder %s23, 1
      %p83 = por %p81, %p82
      %p84 = scmp.ne.s32.totalorder %s75, %s76
      %p85 = scmp.eq.s32.totalorder %s23, 0
      %p86 = por %p84, %p85
      %p87 = scmp.ne.s32.totalorder %s75, %s76
      %p88 = scmp.eq.s32.totalorder %s24, 1
      %p89 = por %p87, %p88
      %p91 = scmp.ne.s32.totalorder %s76, %s90
      %p92 = scmp.eq.s32.totalorder %s24, 0
      %p93 = por %p91, %p92
      %s95 = sadd.s32 %s94, 1
      %p98 = scmp.eq.s32.totalorder %s18, 1
      %p99 = scmp.ne.s32.totalorder %s94, %s96
      %p100 = scmp.eq.s32.totalorder %s18, 0
      %p101 = por %p99, %p100
      %p102 = scmp.ne.s32.totalorder %s94, %s96
      %p103 = scmp.eq.s32.totalorder %s23, 1
      %p104 = por %p102, %p103
      %p105 = scmp.ne.s32.totalorder %s96, %s97
      %p106 = scmp.eq.s32.totalorder %s23, 0
      %p107 = por %p105, %p106
      %p108 = scmp.ne.s32.totalorder %s96, %s97
      %p109 = scmp.eq.s32.totalorder %s24, 1
      %p110 = por %p108, %p109
      %p112 = scmp.ne.s32.totalorder %s97, %s111
      %p113 = scmp.eq.s32.totalorder %s24, 0
      %p114 = por %p112, %p113
      %s115 = ssub.s32 %s18, %s25
      %p116 = scmp.eq.s32.totalorder %s115, 0
      %s118 = sadd.s32 %s117, 1
      %s119 = scalar_select %p116, %s117, %s118
      %p122 = pneg %p116
      %p123 = scmp.eq.s32.totalorder %s18, 1
      %p124 = por %p122, %p123
      %p125 = scmp.ne.s32.totalorder %s117, %s120
      %p126 = scmp.eq.s32.totalorder %s18, 0
      %p127 = por %p125, %p126
      %p128 = scmp.ne.s32.totalorder %s117, %s120
      %p129 = scmp.eq.s32.totalorder %s23, 1
      %p130 = por %p128, %p129
      %p131 = scmp.ne.s32.totalorder %s120, %s121
      %p132 = scmp.eq.s32.totalorder %s23, 0
      %p133 = por %p131, %p132
      %p134 = scmp.ne.s32.totalorder %s120, %s121
      %p135 = scmp.eq.s32.totalorder %s24, 1
      %p136 = por %p134, %p135
      %p138 = scmp.ne.s32.totalorder %s121, %s137
      %p139 = scmp.eq.s32.totalorder %s24, 0
      %p140 = por %p138, %p139
      %p141 = scmp.le.s32.totalorder 1, %s18
      %p142 = scmp.lt.s32.totalorder %s18, 3
      %p143 = pnand %p141, %p142
      %p144 = pneg %p143
      // Predicated region
      $region9: #{tpu_custom_call.1} parent=5 // pred_check
        _
      $region10: #{tpu_custom_call.1} parent=5 // pred_check_branch
        %146 = sbr.rel (%p143) target = $region12
      $region11: #{tpu_custom_call.1} parent=5 // pred_region
        %s147 = ssub.s32 %s18, 1
        // Predicated region
        $region13: #{tpu_custom_call.1} parent=11 // pred_check
          %p148 = pneg %p65
        $region14: #{tpu_custom_call.1} parent=11 // pred_check_branch
          %150 = sbr.rel (%p148) target = $region16
        $region15: #{tpu_custom_call.1} parent=11 // pred_region
          %s152 = ssub.s32 128, 128
          %153 = vsyncadd [#allocation6], %s152
          %s155 = sshll.u32 [#allocation5], 4
          %s156 = int_to_ptr.vmem [resolvable:$true] %s155
          %158 = dma.hbm_to_vmem [thread:$0]  %s1, 128, %s156, [#allocation6]
        $region16: #{tpu_custom_call.1} parent=11 // pred_fallthru
          _
        // Predicated region
        $region17: #{tpu_custom_call.1} parent=11 // pred_check
          %p159 = pneg %p86
        $region18: #{tpu_custom_call.1} parent=11 // pred_check_branch
          %161 = sbr.rel (%p159) target = $region20
        $region19: #{tpu_custom_call.1} parent=11 // pred_region
          %s163 = ssub.s32 128, 128
          %164 = vsyncadd [#allocation6], %s163
          %s166 = sshll.u32 [#allocation7], 4
          %s167 = int_to_ptr.vmem [resolvable:$true] %s166
          %169 = dma.hbm_to_vmem [thread:$0]  %s2, 128, %s167, [#allocation6]
        $region20: #{tpu_custom_call.1} parent=11 // pred_fallthru
          _
        // Predicated region
        $region21: #{tpu_custom_call.1} parent=11 // pred_check
          %p170 = pneg %p107
        $region22: #{tpu_custom_call.1} parent=11 // pred_check_branch
          %172 = sbr.rel (%p170) target = $region24
        $region23: #{tpu_custom_call.1} parent=11 // pred_region
          %s174 = ssub.s32 288, 288
          %175 = vsyncadd [#allocation9], %s174
          %s176 = sshll.u32 [#allocation8], 4
          %s177 = int_to_ptr.vmem [resolvable:$true] %s176
          %182 = dma.hbm_to_vmem [thread:$0]  %s3, 288, %s177, [#allocation9], 32, 32, 2
        $region24: #{tpu_custom_call.1} parent=11 // pred_fallthru
          _
      $region12: #{tpu_custom_call.1} parent=5 // pred_fallthru
        _
      %p183 = scmp.lt.s32.totalorder %s18, 2
      // Predicated region
      $region25: #{tpu_custom_call.1} parent=5 // pred_check
        %p184 = pneg %p183
      $region26: #{tpu_custom_call.1} parent=5 // pred_check_branch
        %186 = sbr.rel (%p184) target = $region28
      $region27: #{tpu_custom_call.1} parent=5 // pred_region
        // Predicated region
        $region29: #{tpu_custom_call.1} parent=27 // pred_check
          %p187 = pneg %p38
        $region30: #{tpu_custom_call.1} parent=27 // pred_check_branch
          %189 = sbr.rel (%p187) target = $region32
        $region31: #{tpu_custom_call.1} parent=27 // pred_region
          %s190 = sand.u32 %s28, 1
          %s191 = scalar_lea.sflag [#allocation3], %s190
          %s192 = sand.u32 %s28, 1
          %s193 = smul.addr %s192, 16
          %s194 = scalar_lea.vmem [#allocation2], %s193
          %s196 = ssub.s32 256, 256
          %197 = vsyncadd %s191, %s196
          %s198 = smul.addr %s18, 2
          %s199 = smul.addr %s198, 128
          %s200 = scalar_lea.hbm %s0, %s199
          %s202 = sshll.u32 %s194, 4
          %s203 = int_to_ptr.vmem [resolvable:$true] %s202
          %205 = dma.hbm_to_vmem [thread:$0]  %s200, 256, %s203, %s191
        $region32: #{tpu_custom_call.1} parent=27 // pred_fallthru
          _
      $region28: #{tpu_custom_call.1} parent=5 // pred_fallthru
        _
      %p206 = scmp.le.s32.totalorder 1, %s18
      %p207 = scmp.lt.s32.totalorder %s18, 3
      %p208 = pnand %p206, %p207
      %p209 = pneg %p208
      // Predicated region
      $region33: #{tpu_custom_call.1} parent=5 // pred_check
        _
      $region34: #{tpu_custom_call.1} parent=5 // pred_check_branch
        %211 = sbr.rel (%p208) target = $region36
      $region35: #{tpu_custom_call.1} parent=5 // pred_region
        %s212 = ssub.s32 %s18, 1
        %s213 = sand.u32 %s31, 1
        %s214 = scalar_lea.sflag [#allocation3], %s213
        %s215 = sand.u32 %s31, 1
        %s216 = smul.addr %s215, 16
        %s217 = scalar_lea.vmem [#allocation2], %s216
        // Predicated region
        $region37: #{tpu_custom_call.1} parent=35 // pred_check
          %p218 = pneg %p44
        $region38: #{tpu_custom_call.1} parent=35 // pred_check_branch
          %220 = sbr.rel (%p218) target = $region40
        $region39: #{tpu_custom_call.1} parent=35 // pred_region
          %221 = dma.done %s214, 256
        $region40: #{tpu_custom_call.1} parent=35 // pred_fallthru
          _
        // Predicated region
        $region41: #{tpu_custom_call.1} parent=35 // pred_check
          %p222 = pneg %p65
        $region42: #{tpu_custom_call.1} parent=35 // pred_check_branch
          %224 = sbr.rel (%p222) target = $region44
        $region43: #{tpu_custom_call.1} parent=35 // pred_region
          %225 = dma.done [#allocation6], 128
        $region44: #{tpu_custom_call.1} parent=35 // pred_fallthru
          _
        // Predicated region
        $region45: #{tpu_custom_call.1} parent=35 // pred_check
          %p226 = pneg %p86
        $region46: #{tpu_custom_call.1} parent=35 // pred_check_branch
          %228 = sbr.rel (%p226) target = $region48
        $region47: #{tpu_custom_call.1} parent=35 // pred_region
          %229 = dma.done [#allocation6], 128
        $region48: #{tpu_custom_call.1} parent=35 // pred_fallthru
          _
        // Predicated region
        $region49: #{tpu_custom_call.1} parent=35 // pred_check
          %p230 = pneg %p107
        $region50: #{tpu_custom_call.1} parent=35 // pred_check_branch
          %232 = sbr.rel (%p230) target = $region52
        $region51: #{tpu_custom_call.1} parent=35 // pred_region
          %233 = dma.done [#allocation9], 288
        $region52: #{tpu_custom_call.1} parent=35 // pred_fallthru
          _
        %s234 = sand.u32 %s31, 1
        %s235 = scalar_lea.sflag [#allocation3], %s234
        %s236 = sand.u32 %s31, 1
        %s237 = smul.addr %s236, 16
        %s238 = scalar_lea.vmem [#allocation2], %s237
        %p239 = pneg %p44
        %p240 = pneg %p41
        %p241 = pneg %p65
        %p242 = pneg %p62
        %p243 = pneg %p86
        %p244 = pneg %p83
        %p245 = pneg %p107
        %p246 = pneg %p104
        %p247 = pneg %p133
        %p248 = pneg %p130
        %s249 = sand.u32 %s120, 1
        %s250 = scalar_lea.sflag [#allocation4], %s249
        %s251 = sand.u32 %s120, 1
        %s252 = smul.addr %s251, 16
        %s253 = scalar_lea.vmem [#allocation10], %s252
        %v254 = vld [vmem:[%s217] sm:$0xff]
        %v255 = vld [vmem:[%s217 + $0x8] sm:$0xff]
        %256 = vrot.lane.b32.xlu0 %v254, 17
        %v257 = vpop.permute.xlu0 %256
        %258 = vrot.lane.b32.xlu0 %v255, 17
        %v259 = vpop.permute.xlu0 %258
        %v260 = vlaneseq
        %v261 = vand.u32 %v260, 127
        %vm262 = vcmp.lt.s32.totalorder %v261, 17
        %v263 = vsel %vm262, %v257, %v259
        %v264 = vsel %vm262, %v259, %v257
        %v265 = vld [vmem:[#allocation8] sm:$0x3]
        %v267 = vlaneseq
        %v268 = vshrl.u32 %v267, 7
        %v269 = vsub.s32 0, %v268
        %v270 = vrot.slane %v265, %v269
        %v271 = vlaneseq
        %v272 = vshrl.u32 %v271, 7
        %v273 = vsub.s32 1, %v272
        %v274 = vrot.slane %v265, %v273
        %v277 = vmul.f32 %v264, %v270
        %v278 = vmul.f32 %v263, %v274
        %279 = vrot.lane.b32.xlu0 %v254, 16
        %v280 = vpop.permute.xlu0 %279
        %281 = vrot.lane.b32.xlu0 %v255, 16
        %v282 = vpop.permute.xlu0 %281
        %vm283 = vcmp.lt.s32.totalorder %v261, 16
        %v284 = vsel %vm283, %v280, %v282
        %v285 = vsel %vm283, %v282, %v280
        %s286 = scalar_lea.vmem [#allocation8], 2
        %v287 = vld [vmem:[%s286] sm:$0x3]
        %v289 = vlaneseq
        %v290 = vshrl.u32 %v289, 7
        %v291 = vsub.s32 0, %v290
        %v292 = vrot.slane %v287, %v291
        %v293 = vlaneseq
        %v294 = vshrl.u32 %v293, 7
        %v295 = vsub.s32 1, %v294
        %v296 = vrot.slane %v287, %v295
        %v299 = vmul.f32 %v285, %v292
        %v300 = vmul.f32 %v284, %v296
        %301 = vrot.lane.b32.xlu0 %v254, 15
        %v302 = vpop.permute.xlu0 %301
        %303 = vrot.lane.b32.xlu0 %v255, 15
        %v304 = vpop.permute.xlu0 %303
        %vm305 = vcmp.lt.s32.totalorder %v261, 15
        %v306 = vsel %vm305, %v302, %v304
        %v307 = vsel %vm305, %v304, %v302
        %s308 = scalar_lea.vmem [#allocation8], 4
        %v309 = vld [vmem:[%s308] sm:$0x3]
        %v311 = vlaneseq
        %v312 = vshrl.u32 %v311, 7
        %v313 = vsub.s32 0, %v312
        %v314 = vrot.slane %v309, %v313
        %v315 = vlaneseq
        %v316 = vshrl.u32 %v315, 7
        %v317 = vsub.s32 1, %v316
        %v318 = vrot.slane %v309, %v317
        %v321 = vmul.f32 %v307, %v314
        %v322 = vmul.f32 %v306, %v318
        %323 = vrot.lane.b32.xlu0 %v254, 1
        %v324 = vpop.permute.xlu0 %323
        %325 = vrot.lane.b32.xlu0 %v255, 1
        %v326 = vpop.permute.xlu0 %325
        %vm327 = vcmp.lt.s32.totalorder %v261, 1
        %v328 = vsel %vm327, %v324, %v326
        %v329 = vsel %vm327, %v326, %v324
        %s330 = scalar_lea.vmem [#allocation8], 6
        %v331 = vld [vmem:[%s330] sm:$0x3]
        %v333 = vlaneseq
        %v334 = vshrl.u32 %v333, 7
        %v335 = vsub.s32 0, %v334
        %v336 = vrot.slane %v331, %v335
        %v337 = vlaneseq
        %v338 = vshrl.u32 %v337, 7
        %v339 = vsub.s32 1, %v338
        %v340 = vrot.slane %v331, %v339
        %v343 = vmul.f32 %v329, %v336
        %v344 = vmul.f32 %v328, %v340
        %345 = vrot.lane.b32.xlu0 %v254, 127
        %v346 = vpop.permute.xlu0 %345
        %347 = vrot.lane.b32.xlu0 %v255, 127
        %v348 = vpop.permute.xlu0 %347
        %vm349 = vcmp.lt.s32.totalorder %v261, 127
        %v350 = vsel %vm349, %v346, %v348
        %v351 = vsel %vm349, %v348, %v346
        %s352 = scalar_lea.vmem [#allocation8], 10
        %v353 = vld [vmem:[%s352] sm:$0x3]
        %v355 = vlaneseq
        %v356 = vshrl.u32 %v355, 7
        %v357 = vsub.s32 0, %v356
        %v358 = vrot.slane %v353, %v357
        %v359 = vlaneseq
        %v360 = vshrl.u32 %v359, 7
        %v361 = vsub.s32 1, %v360
        %v362 = vrot.slane %v353, %v361
        %v365 = vmul.f32 %v350, %v358
        %v366 = vmul.f32 %v351, %v362
        %367 = vrot.lane.b32.xlu0 %v254, 113
        %v368 = vpop.permute.xlu0 %367
        %369 = vrot.lane.b32.xlu0 %v255, 113
        %v370 = vpop.permute.xlu0 %369
        %vm371 = vcmp.lt.s32.totalorder %v261, 113
        %v372 = vsel %vm371, %v368, %v370
        %v373 = vsel %vm371, %v370, %v368
        %s374 = scalar_lea.vmem [#allocation8], 12
        %v375 = vld [vmem:[%s374] sm:$0x3]
        %v377 = vlaneseq
        %v378 = vshrl.u32 %v377, 7
        %v379 = vsub.s32 0, %v378
        %v380 = vrot.slane %v375, %v379
        %v381 = vlaneseq
        %v382 = vshrl.u32 %v381, 7
        %v383 = vsub.s32 1, %v382
        %v384 = vrot.slane %v375, %v383
        %v387 = vmul.f32 %v372, %v380
        %v388 = vmul.f32 %v373, %v384
        %389 = vrot.lane.b32.xlu0 %v254, 112
        %v390 = vpop.permute.xlu0 %389
        %391 = vrot.lane.b32.xlu0 %v255, 112
        %v392 = vpop.permute.xlu0 %391
        %vm393 = vcmp.lt.s32.totalorder %v261, 112
        %v394 = vsel %vm393, %v390, %v392
        %v395 = vsel %vm393, %v392, %v390
        %s396 = scalar_lea.vmem [#allocation8], 14
        %v397 = vld [vmem:[%s396] sm:$0x3]
        %v399 = vlaneseq
        %v400 = vshrl.u32 %v399, 7
        %v401 = vsub.s32 0, %v400
        %v402 = vrot.slane %v397, %v401
        %v403 = vlaneseq
        %v404 = vshrl.u32 %v403, 7
        %v405 = vsub.s32 1, %v404
        %v406 = vrot.slane %v397, %v405
        %v409 = vmul.f32 %v394, %v402
        %v410 = vmul.f32 %v395, %v406
        %411 = vrot.lane.b32.xlu0 %v254, 111
        %v412 = vpop.permute.xlu0 %411
        %413 = vrot.lane.b32.xlu0 %v255, 111
        %v414 = vpop.permute.xlu0 %413
        %vm415 = vcmp.lt.s32.totalorder %v261, 111
        %v416 = vsel %vm415, %v412, %v414
        %v417 = vsel %vm415, %v414, %v412
        %s418 = scalar_lea.vmem [#allocation8], 16
        %v419 = vld [vmem:[%s418] sm:$0x3]
        %v421 = vlaneseq
        %v422 = vshrl.u32 %v421, 7
        %v423 = vsub.s32 0, %v422
        %v424 = vrot.slane %v419, %v423
        %v425 = vlaneseq
        %v426 = vshrl.u32 %v425, 7
        %v427 = vsub.s32 1, %v426
        %v428 = vrot.slane %v419, %v427
        %v431 = vmul.f32 %v416, %v424
        %v432 = vmul.f32 %v417, %v428
        %v433 = vld [vmem:[#allocation5] sm:$0xff]
        %vm434 = vcmask 588800
        %v436 = vsel %vm434, %v433, 0
        %438 = vmatprep.subr.mxu0 %v278
        %439 = vmatpush1.msra.mxu0 %v277
        %440 = vmatprep.subr.mxu0 %v300
        %441 = vmatpush1.msra.mxu0 %v299
        %442 = vmatprep.subr.mxu0 %v322
        %443 = vmatpush1.msra.mxu0 %v321
        %444 = vmatprep.subr.mxu0 %v344
        %445 = vmatpush1.msra.mxu0 %v343
        %446 = vmatprep.subr.mxu0 %v255
        %447 = vmatpush1.msra.mxu0 %v254
        %448 = vmatprep.subr.mxu0 %v366
        %449 = vmatpush1.msra.mxu0 %v365
        %450 = vmatprep.subr.mxu0 %v388
        %451 = vmatpush1.msra.mxu0 %v387
        %452 = vmatprep.subr.mxu0 %v410
        %453 = vmatpush1.msra.mxu0 %v409
        %454 = vmatprep.subr.mxu0 %v432
        %455 = vmatpush1.msra.mxu0 %v431
        %456 = vmatprep.subr.mxu0 0.0
        %457 = vmatpush1.msra.mxu0 0.0
        %458 = vmatprep.subr.mxu0 0.0
        %459 = vmatpush1.msra.mxu0 0.0
        %460 = vmatprep.subr.mxu0 0.0
        %461 = vmatpush1.msra.mxu0 0.0
        %462 = vmatprep.subr.mxu0 0.0
        %463 = vmatpush1.msra.mxu0 0.0
        %464 = vmatprep.subr.mxu0 0.0
        %465 = vmatpush1.msra.mxu0 0.0
        %466 = vmatprep.subr.mxu0 0.0
        %467 = vmatpush1.msra.mxu0 0.0
        %468 = vmatprep.subr.mxu0 0.0
        %469 = vmatpush1.msra.mxu0 0.0
        %470 = vmatprep.subr.mxu0 0.0
        %471 = vmatpush1.msra.mxu0 0.0
        %472 = vmatprep.subr.mxu0 0.0
        %473 = vmatpush1.msra.mxu0 0.0
        %474 = vmatprep.subr.mxu0 0.0
        %475 = vmatpush1.msra.mxu0 0.0
        %476 = vmatprep.subr.mxu0 0.0
        %477 = vmatpush1.msra.mxu0 0.0
        %478 = vmatprep.subr.mxu0 0.0
        %479 = vmatpush1.msra.mxu0 0.0
        %480 = vmatprep.subr.mxu0 0.0
        %481 = vmatpush1.msra.mxu0 0.0
        %482 = vmatprep.subr.mxu0 0.0
        %483 = vmatpush1.msra.mxu0 0.0
        %484 = vmatprep.subr.mxu0 0.0
        %485 = vmatpush1.msra.mxu0 0.0
        %486 = vmatprep.subr.mxu0 0.0
        %487 = vmatpush1.msra.mxu0 0.0
        %488 = vmatprep.subr.mxu0 0.0
        %489 = vmatpush1.msra.mxu0 0.0
        %490 = vmatprep.subr.mxu0 0.0
        %491 = vmatpush1.msra.mxu0 0.0
        %492 = vmatprep.subr.mxu0 0.0
        %493 = vmatpush1.msra.mxu0 0.0
        %494 = vmatprep.subr.mxu0 0.0
        %495 = vmatpush1.msra.mxu0 0.0
        %496 = vmatprep.subr.mxu0 0.0
        %497 = vmatpush1.msra.mxu0 0.0
        %498 = vmatprep.subr.mxu0 0.0
        %499 = vmatpush1.msra.mxu0 0.0
        %500 = vmatprep.subr.mxu0 0.0
        %501 = vmatpush1.msra.mxu0 0.0
        %502 = vmatprep.mubr.f32.mxu0 0.0
        %503 = vmatmul.mubr.f32.gmra.mrb[0].mxu0 %v436
        %v504 = vpop.f32.mrb[0].mxu0
        %v505 = vadd.f32 0.0, %v504
        %v506 = vpop.f32.mrb[0].mxu0
        %v507 = vadd.f32 0.0, %v506
        %508 = vdwg.mxu0
        %v509 = vadd.f32 %v505, %v507
        %510 = vadd.xlane.f32.xlu0 %v509
        %v511 = vpop.xlane.xlu0 %510
        %v512 = vmul.f32 %v511, 0.00390625
        %v513 = vmul.f32 %v505, %v505
        %v514 = vmul.f32 %v507, %v507
        %v515 = vadd.f32 %v513, %v514
        %516 = vadd.xlane.f32.xlu0 %v515
        %v517 = vpop.xlane.xlu0 %516
        %v518 = vmul.f32 %v517, 0.00390625
        %v519 = vmul.f32 %v512, %v512
        %v520 = vsub.f32 %v518, %v519
        %v521 = vsub.f32 %v505, %v512
        %v522 = vsub.f32 %v507, %v512
        %v523 = vadd.f32 %v520, 1e-05
        %v524 = vrsqrt.pop %v523
        %v525 = vmul.f32 %v521, %v524
        %v526 = vmul.f32 %v522, %v524
        %v527 = vmax.f32 %v525, 0.0
        %v528 = vmax.f32 %v526, 0.0
        %529 = vrot.lane.b32.xlu0 %v527, 17
        %v530 = vpop.permute.xlu0 %529
        %531 = vrot.lane.b32.xlu0 %v528, 17
        %v532 = vpop.permute.xlu0 %531
        %v533 = vsel %vm262, %v530, %v532
        %v534 = vsel %vm262, %v532, %v530
        %v535 = vmul.f32 %v534, %v270
        %v536 = vmul.f32 %v533, %v274
        %537 = vrot.lane.b32.xlu0 %v527, 16
        %v538 = vpop.permute.xlu0 %537
        %539 = vrot.lane.b32.xlu0 %v528, 16
        %v540 = vpop.permute.xlu0 %539
        %v541 = vsel %vm283, %v538, %v540
        %v542 = vsel %vm283, %v540, %v538
        %v543 = vmul.f32 %v542, %v292
        %v544 = vmul.f32 %v541, %v296
        %545 = vrot.lane.b32.xlu0 %v527, 15
        %v546 = vpop.permute.xlu0 %545
        %547 = vrot.lane.b32.xlu0 %v528, 15
        %v548 = vpop.permute.xlu0 %547
        %v549 = vsel %vm305, %v546, %v548
        %v550 = vsel %vm305, %v548, %v546
        %v551 = vmul.f32 %v550, %v314
        %v552 = vmul.f32 %v549, %v318
        %553 = vrot.lane.b32.xlu0 %v527, 1
        %v554 = vpop.permute.xlu0 %553
        %555 = vrot.lane.b32.xlu0 %v528, 1
        %v556 = vpop.permute.xlu0 %555
        %v557 = vsel %vm327, %v554, %v556
        %v558 = vsel %vm327, %v556, %v554
        %v559 = vmul.f32 %v558, %v336
        %v560 = vmul.f32 %v557, %v340
        %561 = vrot.lane.b32.xlu0 %v527, 127
        %v562 = vpop.permute.xlu0 %561
        %563 = vrot.lane.b32.xlu0 %v528, 127
        %v564 = vpop.permute.xlu0 %563
        %v565 = vsel %vm349, %v562, %v564
        %v566 = vsel %vm349, %v564, %v562
        %v567 = vmul.f32 %v565, %v358
        %v568 = vmul.f32 %v566, %v362
        %569 = vrot.lane.b32.xlu0 %v527, 113
        %v570 = vpop.permute.xlu0 %569
        %571 = vrot.lane.b32.xlu0 %v528, 113
        %v572 = vpop.permute.xlu0 %571
        %v573 = vsel %vm371, %v570, %v572
        %v574 = vsel %vm371, %v572, %v570
        %v575 = vmul.f32 %v573, %v380
        %v576 = vmul.f32 %v574, %v384
        %577 = vrot.lane.b32.xlu0 %v527, 112
        %v578 = vpop.permute.xlu0 %577
        %579 = vrot.lane.b32.xlu0 %v528, 112
        %v580 = vpop.permute.xlu0 %579
        %v581 = vsel %vm393, %v578, %v580
        %v582 = vsel %vm393, %v580, %v578
        %v583 = vmul.f32 %v581, %v402
        %v584 = vmul.f32 %v582, %v406
        %585 = vrot.lane.b32.xlu0 %v527, 111
        %v586 = vpop.permute.xlu0 %585
        %587 = vrot.lane.b32.xlu0 %v528, 111
        %v588 = vpop.permute.xlu0 %587
        %v589 = vsel %vm415, %v586, %v588
        %v590 = vsel %vm415, %v588, %v586
        %v591 = vmul.f32 %v589, %v424
        %v592 = vmul.f32 %v590, %v428
        %v593 = vld [vmem:[#allocation7] sm:$0xff]
        %v595 = vsel %vm434, %v593, 0
        %597 = vmatprep.subr.mxu0 %v536
        %598 = vmatpush1.msra.mxu0 %v535
        %599 = vmatprep.subr.mxu0 %v544
        %600 = vmatpush1.msra.mxu0 %v543
        %601 = vmatprep.subr.mxu0 %v552
        %602 = vmatpush1.msra.mxu0 %v551
        %603 = vmatprep.subr.mxu0 %v560
        %604 = vmatpush1.msra.mxu0 %v559
        %605 = vmatprep.subr.mxu0 %v528
        %606 = vmatpush1.msra.mxu0 %v527
        %607 = vmatprep.subr.mxu0 %v568
        %608 = vmatpush1.msra.mxu0 %v567
        %609 = vmatprep.subr.mxu0 %v576
        %610 = vmatpush1.msra.mxu0 %v575
        %611 = vmatprep.subr.mxu0 %v584
        %612 = vmatpush1.msra.mxu0 %v583
        %613 = vmatprep.subr.mxu0 %v592
        %614 = vmatpush1.msra.mxu0 %v591
        %615 = vmatprep.subr.mxu0 0.0
        %616 = vmatpush1.msra.mxu0 0.0
        %617 = vmatprep.subr.mxu0 0.0
        %618 = vmatpush1.msra.mxu0 0.0
        %619 = vmatprep.subr.mxu0 0.0
        %620 = vmatpush1.msra.mxu0 0.0
        %621 = vmatprep.subr.mxu0 0.0
        %622 = vmatpush1.msra.mxu0 0.0
        %623 = vmatprep.subr.mxu0 0.0
        %624 = vmatpush1.msra.mxu0 0.0
        %625 = vmatprep.subr.mxu0 0.0
        %626 = vmatpush1.msra.mxu0 0.0
        %627 = vmatprep.subr.mxu0 0.0
        %628 = vmatpush1.msra.mxu0 0.0
        %629 = vmatprep.subr.mxu0 0.0
        %630 = vmatpush1.msra.mxu0 0.0
        %631 = vmatprep.subr.mxu0 0.0
        %632 = vmatpush1.msra.mxu0 0.0
        %633 = vmatprep.subr.mxu0 0.0
        %634 = vmatpush1.msra.mxu0 0.0
        %635 = vmatprep.subr.mxu0 0.0
        %636 = vmatpush1.msra.mxu0 0.0
        %637 = vmatprep.subr.mxu0 0.0
        %638 = vmatpush1.msra.mxu0 0.0
        %639 = vmatprep.subr.mxu0 0.0
        %640 = vmatpush1.msra.mxu0 0.0
        %641 = vmatprep.subr.mxu0 0.0
        %642 = vmatpush1.msra.mxu0 0.0
        %643 = vmatprep.subr.mxu0 0.0
        %644 = vmatpush1.msra.mxu0 0.0
        %645 = vmatprep.subr.mxu0 0.0
        %646 = vmatpush1.msra.mxu0 0.0
        %647 = vmatprep.subr.mxu0 0.0
        %648 = vmatpush1.msra.mxu0 0.0
        %649 = vmatprep.subr.mxu0 0.0
        %650 = vmatpush1.msra.mxu0 0.0
        %651 = vmatprep.subr.mxu0 0.0
        %652 = vmatpush1.msra.mxu0 0.0
        %653 = vmatprep.subr.mxu0 0.0
        %654 = vmatpush1.msra.mxu0 0.0
        %655 = vmatprep.subr.mxu0 0.0
        %656 = vmatpush1.msra.mxu0 0.0
        %657 = vmatprep.subr.mxu0 0.0
        %658 = vmatpush1.msra.mxu0 0.0
        %659 = vmatprep.subr.mxu0 0.0
        %660 = vmatpush1.msra.mxu0 0.0
        %661 = vmatprep.mubr.f32.mxu0 0.0
        %662 = vmatmul.mubr.f32.gmra.mrb[0].mxu0 %v595
        %v663 = vpop.f32.mrb[0].mxu0
        %v664 = vadd.f32 0.0, %v663
        %v665 = vpop.f32.mrb[0].mxu0
        %v666 = vadd.f32 0.0, %v665
        %667 = vdwg.mxu0
        %v668 = vadd.f32 %v664, %v666
        %669 = vadd.xlane.f32.xlu0 %v668
        %v670 = vpop.xlane.xlu0 %669
        %v671 = vmul.f32 %v670, 0.00390625
        %v672 = vmul.f32 %v664, %v664
        %v673 = vmul.f32 %v666, %v666
        %v674 = vadd.f32 %v672, %v673
        %675 = vadd.xlane.f32.xlu0 %v674
        %v676 = vpop.xlane.xlu0 %675
        %v677 = vmul.f32 %v676, 0.00390625
        %v678 = vmul.f32 %v671, %v671
        %v679 = vsub.f32 %v677, %v678
        %v680 = vsub.f32 %v664, %v671
        %v681 = vsub.f32 %v666, %v671
        %v682 = vadd.f32 %v679, 1e-05
        %v683 = vrsqrt.pop %v682
        %v684 = vmul.f32 %v680, %v683
        %v685 = vmul.f32 %v681, %v683
        %v686 = vadd.f32 %v684, %v254
        %v687 = vadd.f32 %v685, %v255
        %688 = vst [vmem:[%s253] sm:$0xff] %v686
        %689 = vst [vmem:[%s253 + $0x8] sm:$0xff] %v687
        %s690 = sand.u32 %s120, 1
        %s691 = scalar_lea.sflag [#allocation4], %s690
        %s692 = sand.u32 %s120, 1
        %s693 = smul.addr %s692, 16
        %s694 = scalar_lea.vmem [#allocation10], %s693
        // Predicated region
        $region53: #{tpu_custom_call.1} parent=35 // pred_check
          %p695 = pneg %p130
        $region54: #{tpu_custom_call.1} parent=35 // pred_check_branch
          %697 = sbr.rel (%p695) target = $region56
        $region55: #{tpu_custom_call.1} parent=35 // pred_region
          %s699 = ssub.s32 256, 256
          %700 = vsyncadd %s691, %s699
          %s701 = smul.addr %s23, 2
          %s702 = smul.addr %s701, 128
          %s703 = scalar_lea.hbm %s4, %s702
          %s705 = sshll.u32 %s694, 4
          %s706 = int_to_ptr.vmem [resolvable:$true] %s705
          %708 = dma.vmem_to_hbm [thread:$0]  %s706, 256, %s703, %s691
        $region56: #{tpu_custom_call.1} parent=35 // pred_fallthru
          _
      $region36: #{tpu_custom_call.1} parent=5 // pred_fallthru
        _
      %p709 = scmp.le.s32.totalorder 2, %s18
      // Predicated region
      $region57: #{tpu_custom_call.1} parent=5 // pred_check
        %p710 = pneg %p709
      $region58: #{tpu_custom_call.1} parent=5 // pred_check_branch
        %712 = sbr.rel (%p710) target = $region60
      $region59: #{tpu_custom_call.1} parent=5 // pred_region
        %s713 = ssub.s32 %s18, 2
        // Predicated region
        $region61: #{tpu_custom_call.1} parent=59 // pred_check
          %p714 = pneg %p136
        $region62: #{tpu_custom_call.1} parent=59 // pred_check_branch
          %716 = sbr.rel (%p714) target = $region64
        $region63: #{tpu_custom_call.1} parent=59 // pred_region
          %s717 = sand.u32 %s121, 1
          %s718 = scalar_lea.sflag [#allocation4], %s717
          %s719 = sand.u32 %s121, 1
          %s720 = smul.addr %s719, 16
          %s721 = scalar_lea.vmem [#allocation10], %s720
          %722 = dma.done %s718, 256
        $region64: #{tpu_custom_call.1} parent=59 // pred_fallthru
          _
      $region60: #{tpu_custom_call.1} parent=5 // pred_fallthru
        _
    $region6: #{tpu_custom_call.1} parent=1 // loop_footer
      %s22 = sadd.s32 1, %s18
    $region7: #{tpu_custom_call.1} parent=1 // loop_footer_branch
      %17 = sbr.rel target = $region3
    $region8: #{tpu_custom_call.1} parent=1 // loop_exit
      _
    %723 = vsyncpa [#allocation3], 1
    %s724 = scalar_lea.sflag [#allocation3], 1
    %725 = vsyncpa %s724, 1
    %726 = vsyncpa [#allocation6], 1
    %727 = vsyncpa [#allocation9], 1
    %728 = vsyncpa [#allocation4], 1
    %s729 = scalar_lea.sflag [#allocation4], 1
    %730 = vsyncpa %s729, 1

</llo_original>
